<compile_context>
chip_gen: v6e
topology: v6e:2x2x1
jax: 0.10.0
libtpu: 0.0.40
codegen_flags: <defaults>
</compile_context>

<pallas_src>
import functools

import jax
import jax.numpy as jnp
from jax import lax
from jax.experimental import pallas as pl
from jax.experimental.pallas import tpu as pltpu

LANES = 128
SUBLANES = 8
ROW_ALIGN = 16        # multiple of 16 keeps blocks aligned for f32 (8,128) and bf16 (16,128)
MAX_TILE_ROWS = 1024  # (1024,128) f32 = 512 KiB per buffer -> ~2 MiB pipelined inputs
NUM_SLICES = 2        # leading "parallel" axis -> both TensorCores on v7x


def _round_up(v, m):
    return ((v + m - 1) // m) * m


def _phils_crazy_loss_kernel(x_ref, y_ref, sq_ref, ab_ref, *,
                             tile_rows, steps_per_slice, valid_rows):
    """Accumulate per-slice (8,128) partial sums of (x-y)^2 and |x-y|.

    x_ref, y_ref : (tile_rows, LANES) tiles (native dtype), VMEM
    sq_ref, ab_ref : (1, 8, 128) f32 per-slice partial-sum outputs (VMEM-resident
                     across the "arbitrary" step axis -> accumulators)
    """
    c = pl.program_id(0)   # slice index (sharded across TensorCores on v7x)
    i = pl.program_id(1)   # step within slice (sequential reduction axis)

    @pl.when(i == 0)
    def _init():
        sq_ref[...] = jnp.zeros_like(sq_ref)
        ab_ref[...] = jnp.zeros_like(ab_ref)

    # Mask rows past the end of the data: covers the ragged last block and any
    # fully out-of-range block whose index_map was clamped (its intended
    # row_start >= valid_rows, so the whole tile masks to zero).
    row_start = (c * steps_per_slice + i) * tile_rows
    row_ids = row_start + lax.broadcasted_iota(jnp.int32, (tile_rows, LANES), 0)
    mask = row_ids < valid_rows

    d = x_ref[...].astype(jnp.float32) - y_ref[...].astype(jnp.float32)
    d = jnp.where(mask, d, 0.0)

    # Fold tile_rows down to 8 sublanes with pure elementwise adds (VPU only;
    # no per-step XLU reduction, no SMEM scalar serialization).
    part_sq = (d * d).reshape(-1, SUBLANES, LANES).sum(axis=0)       # (8, 128)
    part_ab = jnp.abs(d).reshape(-1, SUBLANES, LANES).sum(axis=0)    # (8, 128)

    sq_ref[...] += part_sq[None]
    ab_ref[...] += part_ab[None]


def phils_crazy_loss(x, y):
    """out = mean((x - y)**2) * mean(|x - y|), heavy reduction inside Pallas."""
    assert x.shape == y.shape, "loss inputs must have identical shapes"
    n_elems = x.size

    xf = jnp.ravel(x)
    yf = jnp.ravel(y)

    # Pad only when the element count is not lane-aligned (zero padding adds
    # nothing to either sum). For lane-aligned sizes this is a free reshape.
    if n_elems % LANES != 0:
        pad = LANES - (n_elems % LANES)
        xf = jnp.pad(xf, (0, pad))
        yf = jnp.pad(yf, (0, pad))
    rows = xf.size // LANES
    x2 = xf.reshape(rows, LANES)
    y2 = yf.reshape(rows, LANES)

    tile_rows = min(MAX_TILE_ROWS, _round_up(rows, ROW_ALIGN))
    total_blocks = pl.cdiv(rows, tile_rows)
    steps_per_slice = pl.cdiv(total_blocks, NUM_SLICES)

    def in_index_map(c, i):
        # Clamp so any step past the real data re-reads a valid block; its
        # contribution is masked to zero inside the kernel.
        return (jnp.minimum(c * steps_per_slice + i, total_blocks - 1), 0)

    kernel = functools.partial(
        _phils_crazy_loss_kernel,
        tile_rows=tile_rows,
        steps_per_slice=steps_per_slice,
        valid_rows=rows,
    )

    in_bytes = n_elems * (jnp.dtype(x.dtype).itemsize + jnp.dtype(y.dtype).itemsize)
    cost = pl.CostEstimate(
        flops=3 * n_elems,            # sub, square, abs (+ accumulate slack)
        transcendentals=0,
        bytes_accessed=in_bytes + 2 * NUM_SLICES * SUBLANES * LANES * 4,
    )

    part_shape = jax.ShapeDtypeStruct((NUM_SLICES, SUBLANES, LANES), jnp.float32)
    part_spec = pl.BlockSpec((1, SUBLANES, LANES), lambda c, i: (c, 0, 0))

    part_sq, part_ab = pl.pallas_call(
        kernel,
        out_shape=(part_shape, part_shape),
        grid_spec=pltpu.PrefetchScalarGridSpec(
            num_scalar_prefetch=0,
            grid=(NUM_SLICES, steps_per_slice),
            in_specs=[
                pl.BlockSpec((tile_rows, LANES), in_index_map),
                pl.BlockSpec((tile_rows, LANES), in_index_map),
            ],
            out_specs=[part_spec, part_spec],
        ),
        compiler_params=pltpu.CompilerParams(
            dimension_semantics=("parallel", "arbitrary"),
        ),
        cost_estimate=cost,
    )(x2, y2)

    # Tiny final combine over (NUM_SLICES, 8, 128) partials.
    inv_n = 1.0 / float(n_elems)
    mse = jnp.sum(part_sq) * inv_n   # loss_a = MSELoss (mean)
    l1 = jnp.sum(part_ab) * inv_n    # loss_b = L1Loss  (mean)
    return mse * l1


def _reference(x, y):
    d = x.astype(jnp.float32) - y.astype(jnp.float32)
    return jnp.mean(d * d) * jnp.mean(jnp.abs(d))


if __name__ == "__main__":
    key = jax.random.PRNGKey(0)
    kx, ky = jax.random.split(key)
    # NCHW inputs, small shapes: batch=2, channels=4, spatial=16
    x = jax.random.normal(kx, (2, 4, 16, 16), dtype=jnp.float32)
    y = jax.random.normal(ky, (2, 4, 16, 16), dtype=jnp.float32)

    out = jax.block_until_ready(phils_crazy_loss(x, y))
    ref = jax.block_until_ready(_reference(x, y))
    assert jnp.allclose(out, ref, rtol=1e-5, atol=1e-6), (out, ref)

    print("KERNEL_OK")
</pallas_src>

<mosaic_0001>
module attributes {stable_mosaic.version = 11 : i64} {
  func.func @_phils_crazy_loss_kernel(%arg0: i32, %arg1: i32, %arg2: memref<16x128xf32, #tpu.memory_space<vmem>>, %arg3: memref<16x128xf32, #tpu.memory_space<vmem>>, %arg4: memref<1x8x128xf32, #tpu.memory_space<vmem>>, %arg5: memref<1x8x128xf32, #tpu.memory_space<vmem>>) attributes {dimension_semantics = [#tpu.dimension_semantics<parallel>, #tpu.dimension_semantics<arbitrary>], iteration_bounds = array<i64: 2, 1>, scalar_prefetch = 0 : i64, scratch_operands = 0 : i64, tpu.core_type = #tpu.core_type<tc>, window_params = [{transform_indices = @transform_0, window_bounds = array<i64: 16, 128>}, {transform_indices = @transform_1, window_bounds = array<i64: 16, 128>}, {transform_indices = @transform_2, window_bounds = array<i64: 1, 8, 128>}, {transform_indices = @transform_3, window_bounds = array<i64: 1, 8, 128>}]} {
    %c0_i32 = arith.constant 0 : i32
    %0 = arith.cmpi eq, %arg1, %c0_i32 : i32
    %1 = arith.extui %0 : i1 to i32
    %c0_i32_0 = arith.constant 0 : i32
    %2 = arith.cmpi ne, %1, %c0_i32_0 : i32
    scf.if %2 {
      %cst_19 = arith.constant 0.000000e+00 : f32
      %30 = vector.broadcast %cst_19 : f32 to vector<1x8x128xf32>
      %c0_20 = arith.constant 0 : index
      %c0_21 = arith.constant 0 : index
      %c0_22 = arith.constant 0 : index
      %31 = vector.load %arg4[%c0_20, %c0_21, %c0_22] : memref<1x8x128xf32, #tpu.memory_space<vmem>>, vector<1x8x128xf32>
      tpu.vector_store %arg4[%c0_20, %c0_21, %c0_22], %30 {strides = array<i32>} : memref<1x8x128xf32, #tpu.memory_space<vmem>>, vector<1x8x128xf32>,
      %cst_23 = arith.constant 0.000000e+00 : f32
      %32 = vector.broadcast %cst_23 : f32 to vector<1x8x128xf32>
      %c0_24 = arith.constant 0 : index
      %c0_25 = arith.constant 0 : index
      %c0_26 = arith.constant 0 : index
      %33 = vector.load %arg5[%c0_24, %c0_25, %c0_26] : memref<1x8x128xf32, #tpu.memory_space<vmem>>, vector<1x8x128xf32>
      tpu.vector_store %arg5[%c0_24, %c0_25, %c0_26], %32 {strides = array<i32>} : memref<1x8x128xf32, #tpu.memory_space<vmem>>, vector<1x8x128xf32>,
    } else {
    }
    %c1_i32 = arith.constant 1 : i32
    %3 = arith.muli %arg0, %c1_i32 : i32
    %4 = arith.addi %3, %arg1 : i32
    %c16_i32 = arith.constant 16 : i32
    %5 = arith.muli %4, %c16_i32 : i32
    %6 = tpu.iota {dimensions = array<i32: 0>} : vector<16x128xi32>
    %7 = vector.broadcast %5 : i32 to vector<16x128xi32>
    %8 = arith.addi %7, %6 : vector<16x128xi32>
    %c16_i32_1 = arith.constant 16 : i32
    %9 = vector.broadcast %c16_i32_1 : i32 to vector<16x128xi32>
    %10 = arith.cmpi slt, %8, %9 : vector<16x128xi32>
    %c0 = arith.constant 0 : index
    %c0_2 = arith.constant 0 : index
    %11 = vector.load %arg2[%c0, %c0_2] : memref<16x128xf32, #tpu.memory_space<vmem>>, vector<16x128xf32>
    %c0_3 = arith.constant 0 : index
    %c0_4 = arith.constant 0 : index
    %12 = vector.load %arg3[%c0_3, %c0_4] : memref<16x128xf32, #tpu.memory_space<vmem>>, vector<16x128xf32>
    %13 = arith.subf %11, %12 : vector<16x128xf32>
    %cst = arith.constant 0.000000e+00 : f32
    %14 = vector.broadcast %cst : f32 to vector<16x128xf32>
    %15 = arith.select %10, %13, %14 : vector<16x128xi1>, vector<16x128xf32>
    %16 = arith.mulf %15, %15 : vector<16x128xf32>
    %17 = vector.shape_cast %16 : vector<16x128xf32> to vector<2x8x128xf32>
    %cst_5 = arith.constant dense<0.000000e+00> : vector<8x128xf32>
    %18 = vector.multi_reduction <add>, %17, %cst_5 [0] : vector<2x8x128xf32> to vector<8x128xf32>
    %19 = math.absf %15 : vector<16x128xf32>
    %20 = vector.shape_cast %19 : vector<16x128xf32> to vector<2x8x128xf32>
    %cst_6 = arith.constant dense<0.000000e+00> : vector<8x128xf32>
    %21 = vector.multi_reduction <add>, %20, %cst_6 [0] : vector<2x8x128xf32> to vector<8x128xf32>
    %c0_7 = arith.constant 0 : index
    %c0_8 = arith.constant 0 : index
    %c0_9 = arith.constant 0 : index
    %22 = vector.load %arg4[%c0_7, %c0_8, %c0_9] : memref<1x8x128xf32, #tpu.memory_space<vmem>>, vector<1x8x128xf32>
    %23 = vector.shape_cast %18 : vector<8x128xf32> to vector<1x8x128xf32>
    %24 = arith.addf %22, %23 : vector<1x8x128xf32>
    %c0_10 = arith.constant 0 : index
    %c0_11 = arith.constant 0 : index
    %c0_12 = arith.constant 0 : index
    %25 = vector.load %arg4[%c0_10, %c0_11, %c0_12] : memref<1x8x128xf32, #tpu.memory_space<vmem>>, vector<1x8x128xf32>
    tpu.vector_store %arg4[%c0_10, %c0_11, %c0_12], %24 {strides = array<i32>} : memref<1x8x128xf32, #tpu.memory_space<vmem>>, vector<1x8x128xf32>,
    %c0_13 = arith.constant 0 : index
    %c0_14 = arith.constant 0 : index
    %c0_15 = arith.constant 0 : index
    %26 = vector.load %arg5[%c0_13, %c0_14, %c0_15] : memref<1x8x128xf32, #tpu.memory_space<vmem>>, vector<1x8x128xf32>
    %27 = vector.shape_cast %21 : vector<8x128xf32> to vector<1x8x128xf32>
    %28 = arith.addf %26, %27 : vector<1x8x128xf32>
    %c0_16 = arith.constant 0 : index
    %c0_17 = arith.constant 0 : index
    %c0_18 = arith.constant 0 : index
    %29 = vector.load %arg5[%c0_16, %c0_17, %c0_18] : memref<1x8x128xf32, #tpu.memory_space<vmem>>, vector<1x8x128xf32>
    tpu.vector_store %arg5[%c0_16, %c0_17, %c0_18], %28 {strides = array<i32>} : memref<1x8x128xf32, #tpu.memory_space<vmem>>, vector<1x8x128xf32>,
    return
  }
  func.func @transform_0(%arg0: i32, %arg1: i32) -> (i32, i32) {
    %c1_i32 = arith.constant 1 : i32
    %0 = arith.muli %arg0, %c1_i32 : i32
    %1 = arith.addi %0, %arg1 : i32
    %c0_i32 = arith.constant 0 : i32
    %2 = arith.minsi %1, %c0_i32 : i32
    %c0_i32_0 = arith.constant 0 : i32
    %c0_i32_1 = arith.constant 0 : i32
    return %2, %c0_i32_0 : i32, i32
  }
  func.func @transform_1(%arg0: i32, %arg1: i32) -> (i32, i32) {
    %c1_i32 = arith.constant 1 : i32
    %0 = arith.muli %arg0, %c1_i32 : i32
    %1 = arith.addi %0, %arg1 : i32
    %c0_i32 = arith.constant 0 : i32
    %2 = arith.minsi %1, %c0_i32 : i32
    %c0_i32_0 = arith.constant 0 : i32
    %c0_i32_1 = arith.constant 0 : i32
    return %2, %c0_i32_0 : i32, i32
  }
  func.func @transform_2(%arg0: i32, %arg1: i32) -> (i32, i32, i32) {
    %c0_i32 = arith.constant 0 : i32
    %c0_i32_0 = arith.constant 0 : i32
    %c0_i32_1 = arith.constant 0 : i32
    return %arg0, %c0_i32, %c0_i32_0 : i32, i32, i32
  }
  func.func @transform_3(%arg0: i32, %arg1: i32) -> (i32, i32, i32) {
    %c0_i32 = arith.constant 0 : i32
    %c0_i32_0 = arith.constant 0 : i32
    %c0_i32_1 = arith.constant 0 : i32
    return %arg0, %c0_i32, %c0_i32_0 : i32, i32, i32
  }
}

</mosaic_0001>

<llo_original>
// kernel: tpu_custom_call.1
$region0: #{tpu_custom_call.1}
  #allocation0 [shape = 'u32[]', space=smem, size = 0x4, offset = 0x4, fixed_abs, tag = 'smem constant byte address 0x4 - core index']
  #allocation1 [shape = 'u32[144,128]{1,0:T(1,128)}', space=vmem, size = 0x12000, scoped, tag = 'internal scratch']
  %s0 = inlined_call_operand.hbm [shape: f32[16,128], index: 0, kind: input, shape index: {}]
  %s1 = inlined_call_operand.hbm [shape: f32[16,128], index: 1, kind: input, shape index: {}]
  %s2 = inlined_call_operand.hbm [shape: f32[2,8,128], index: 2, kind: output, shape index: {0}]
  %s3 = inlined_call_operand.hbm [shape: f32[2,8,128], index: 3, kind: output, shape index: {1}]
  %4 = xla_tuple %s2, %s3
  %s5 = sld [smem:[#allocation0]]
  $region61: #{tpu_custom_call.1} parent=0
    _
  %s7 = ssub.s32 1, %s5
  %s8 = scalar_select 0, %s7, %s5
  $region1: #{tpu_custom_call.1} parent=0
    #allocation2 [shape = 'u8[16384]{0}', space=vmem, size = 0x4000, scoped, tag = 'input window, operand 0']
    #allocation3 [shape = 's32[2]{0}', space=sflag, size = 0x8, scoped, tag = 'scoped memory for tpu_custom_call.1']
    #allocation4 [shape = 's32[2]{0}', space=sflag, size = 0x8, scoped, tag = 'scoped memory for tpu_custom_call.1']
    #allocation5 [shape = 'u8[16384]{0}', space=vmem, size = 0x4000, scoped, tag = 'input window, operand 1']
    #allocation6 [shape = 's32[2]{0}', space=sflag, size = 0x8, scoped, tag = 'scoped memory for tpu_custom_call.1']
    #allocation7 [shape = 'u8[8192]{0}', space=vmem, size = 0x2000, scoped, tag = 'output window, operand 0']
    #allocation8 [shape = 'u8[8192]{0}', space=vmem, size = 0x2000, scoped, tag = 'output window, operand 1']
    #allocation9 [shape = 's32[2]{0}', space=sflag, size = 0x8, scoped, tag = 'scoped memory for tpu_custom_call.1']
    %9 = vsyncpa [#allocation3], 0
    %s10 = scalar_lea.sflag [#allocation3], 1
    %11 = vsyncpa %s10, 0
    %12 = vsyncpa [#allocation6], 0
    %s13 = scalar_lea.sflag [#allocation6], 1
    %14 = vsyncpa %s13, 0
    %15 = vsyncpa [#allocation4], 0
    %s16 = scalar_lea.sflag [#allocation4], 1
    %17 = vsyncpa %s16, 0
    %18 = vsyncpa [#allocation9], 0
    %s19 = scalar_lea.sflag [#allocation9], 1
    %20 = vsyncpa %s19, 0
    loop: start=0, step=1, limit=4
    $region2: #{tpu_custom_call.1} parent=1 // loop_pre_header
      _
    $region3: #{tpu_custom_call.1} parent=1 // loop_header
      %s22 = sphi 0, %s26
      %p23 = scmp.ge.s32.totalorder %s22, 4
      %s29 = sphi 0, %s41
      %s30 = sphi 0, %s37
      %s31 = sphi 0, %s29
      %s32 = sphi 0, %s30
      %s33 = sphi 0, %s31
      %s34 = sphi 0, %s32
      %s50 = sphi 0, %s52
      %s53 = sphi 0, %s50
      %s54 = sphi 0, %s53
      %s70 = sphi 0, %s54
      %s82 = sphi 0, %s84
      %s85 = sphi 0, %s82
      %s86 = sphi 0, %s85
      %s102 = sphi 0, %s86
      %s108 = sphi 0, %s110
      %s111 = sphi 0, %s108
      %s112 = sphi 0, %s111
      %s128 = sphi 0, %s112
      %s134 = sphi 0, %s136
      %s137 = sphi 0, %s134
      %s138 = sphi 0, %s137
      %s154 = sphi 0, %s138
    $region4: #{tpu_custom_call.1} parent=1 // loop_header_branch
      %25 = sbr.rel (%p23) target = $region8
    $region5: #{tpu_custom_call.1} parent=1 // loop_body
      %s27 = ssub.s32 %s22, 1
      %s28 = ssub.s32 %s22, 2
      %s35 = sadd.s32 1, %s30
      %p36 = scmp.ge.s32.totalorder %s35, 1
      %s37 = scalar_select %p36, 0, %s35
      %s38 = sadd.s32 1, %s29
      %s39 = scalar_select %p36, %s38, %s29
      %p40 = scmp.ge.s32.totalorder %s39, 2
      %s41 = scalar_select %p40, 0, %s39
      %s42 = sadd.s32 %s29, %s30
      %p43 = scmp.lt.s32.totalorder %s42, 0
      %s44 = scalar_select %p43, %s42, 0
      %s45 = sadd.s32 %s41, %s37
      %p46 = scmp.lt.s32.totalorder %s45, 0
      %s47 = scalar_select %p46, %s45, 0
      %s48 = ssub.s32 %s44, %s47
      %p49 = scmp.eq.s32.totalorder %s48, 0
      %s51 = sadd.s32 %s50, 1
      %s52 = scalar_select %p49, %s50, %s51
      %p55 = pneg %p49
      %p56 = scmp.eq.s32.totalorder %s22, 1
      %p57 = por %p55, %p56
      %p58 = scmp.ne.s32.totalorder %s50, %s53
      %p59 = scmp.eq.s32.totalorder %s22, 0
      %p60 = por %p58, %p59
      %p61 = scmp.ne.s32.totalorder %s50, %s53
      %p62 = scmp.eq.s32.totalorder %s27, 1
      %p63 = por %p61, %p62
      %p64 = scmp.ne.s32.totalorder %s53, %s54
      %p65 = scmp.eq.s32.totalorder %s27, 0
      %p66 = por %p64, %p65
      %p67 = scmp.ne.s32.totalorder %s53, %s54
      %p68 = scmp.eq.s32.totalorder %s28, 1
      %p69 = por %p67, %p68
      %p71 = scmp.ne.s32.totalorder %s54, %s70
      %p72 = scmp.eq.s32.totalorder %s28, 0
      %p73 = por %p71, %p72
      %s74 = sadd.s32 %s29, %s30
      %p75 = scmp.lt.s32.totalorder %s74, 0
      %s76 = scalar_select %p75, %s74, 0
      %s77 = sadd.s32 %s41, %s37
      %p78 = scmp.lt.s32.totalorder %s77, 0
      %s79 = scalar_select %p78, %s77, 0
      %s80 = ssub.s32 %s76, %s79
      %p81 = scmp.eq.s32.totalorder %s80, 0
      %s83 = sadd.s32 %s82, 1
      %s84 = scalar_select %p81, %s82, %s83
      %p87 = pneg %p81
      %p88 = scmp.eq.s32.totalorder %s22, 1
      %p89 = por %p87, %p88
      %p90 = scmp.ne.s32.totalorder %s82, %s85
      %p91 = scmp.eq.s32.totalorder %s22, 0
      %p92 = por %p90, %p91
      %p93 = scmp.ne.s32.totalorder %s82, %s85
      %p94 = scmp.eq.s32.totalorder %s27, 1
      %p95 = por %p93, %p94
      %p96 = scmp.ne.s32.totalorder %s85, %s86
      %p97 = scmp.eq.s32.totalorder %s27, 0
      %p98 = por %p96, %p97
      %p99 = scmp.ne.s32.totalorder %s85, %s86
      %p100 = scmp.eq.s32.totalorder %s28, 1
      %p101 = por %p99, %p100
      %p103 = scmp.ne.s32.totalorder %s86, %s102
      %p104 = scmp.eq.s32.totalorder %s28, 0
      %p105 = por %p103, %p104
      %s106 = ssub.s32 %s29, %s41
      %p107 = scmp.eq.s32.totalorder %s106, 0
      %s109 = sadd.s32 %s108, 1
      %s110 = scalar_select %p107, %s108, %s109
      %p113 = pneg %p107
      %p114 = scmp.eq.s32.totalorder %s22, 1
      %p115 = por %p113, %p114
      %p116 = scmp.ne.s32.totalorder %s108, %s111
      %p117 = scmp.eq.s32.totalorder %s22, 0
      %p118 = por %p116, %p117
      %p119 = scmp.ne.s32.totalorder %s108, %s111
      %p120 = scmp.eq.s32.totalorder %s27, 1
      %p121 = por %p119, %p120
      %p122 = scmp.ne.s32.totalorder %s111, %s112
      %p123 = scmp.eq.s32.totalorder %s27, 0
      %p124 = por %p122, %p123
      %p125 = scmp.ne.s32.totalorder %s111, %s112
      %p126 = scmp.eq.s32.totalorder %s28, 1
      %p127 = por %p125, %p126
      %p129 = scmp.ne.s32.totalorder %s112, %s128
      %p130 = scmp.eq.s32.totalorder %s28, 0
      %p131 = por %p129, %p130
      %s132 = ssub.s32 %s29, %s41
      %p133 = scmp.eq.s32.totalorder %s132, 0
      %s135 = sadd.s32 %s134, 1
      %s136 = scalar_select %p133, %s134, %s135
      %p139 = pneg %p133
      %p140 = scmp.eq.s32.totalorder %s22, 1
      %p141 = por %p139, %p140
      %p142 = scmp.ne.s32.totalorder %s134, %s137
      %p143 = scmp.eq.s32.totalorder %s22, 0
      %p144 = por %p142, %p143
      %p145 = scmp.ne.s32.totalorder %s134, %s137
      %p146 = scmp.eq.s32.totalorder %s27, 1
      %p147 = por %p145, %p146
      %p148 = scmp.ne.s32.totalorder %s137, %s138
      %p149 = scmp.eq.s32.totalorder %s27, 0
      %p150 = por %p148, %p149
      %p151 = scmp.ne.s32.totalorder %s137, %s138
      %p152 = scmp.eq.s32.totalorder %s28, 1
      %p153 = por %p151, %p152
      %p155 = scmp.ne.s32.totalorder %s138, %s154
      %p156 = scmp.eq.s32.totalorder %s28, 0
      %p157 = por %p155, %p156
      %p158 = scmp.le.s32.totalorder 1, %s22
      %p159 = scmp.lt.s32.totalorder %s22, 3
      %p160 = pnand %p158, %p159
      %p161 = pneg %p160
      // Predicated region
      $region9: #{tpu_custom_call.1} parent=5 // pred_check
        _
      $region10: #{tpu_custom_call.1} parent=5 // pred_check_branch
        %163 = sbr.rel (%p160) target = $region12
      $region11: #{tpu_custom_call.1} parent=5 // pred_region
        %s164 = ssub.s32 %s22, 1
      $region12: #{tpu_custom_call.1} parent=5 // pred_fallthru
        _
      %p165 = scmp.lt.s32.totalorder %s22, 2
      // Predicated region
      $region13: #{tpu_custom_call.1} parent=5 // pred_check
        %p166 = pneg %p165
      $region14: #{tpu_custom_call.1} parent=5 // pred_check_branch
        %168 = sbr.rel (%p166) target = $region16
      $region15: #{tpu_custom_call.1} parent=5 // pred_region
        // Predicated region
        $region17: #{tpu_custom_call.1} parent=15 // pred_check
          %p169 = pneg %p60
        $region18: #{tpu_custom_call.1} parent=15 // pred_check_branch
          %171 = sbr.rel (%p169) target = $region20
        $region19: #{tpu_custom_call.1} parent=15 // pred_region
          %s172 = sand.u32 %s50, 1
          %s173 = scalar_lea.sflag [#allocation3], %s172
          %s174 = sand.u32 %s50, 1
          %s175 = smul.addr %s174, 16
          %s176 = scalar_lea.vmem [#allocation2], %s175
          %s177 = sadd.s32 %s29, %s30
          %p178 = scmp.lt.s32.totalorder %s177, 0
          %s179 = scalar_select %p178, %s177, 0
          %s180 = smul.u32 2, %s179
          %s182 = ssub.s32 256, 256
          %183 = vsyncadd %s173, %s182
          %s184 = smul.addr %s180, 128
          %s185 = scalar_lea.hbm %s0, %s184
          %s186 = sshll.u32 %s176, 4
          %s187 = int_to_ptr.vmem [resolvable:$true] %s186
          %192 = dma.hbm_to_vmem [thread:$0]  %s185, 256, %s187, %s173, 128, 128, 8
        $region20: #{tpu_custom_call.1} parent=15 // pred_fallthru
          _
        // Predicated region
        $region21: #{tpu_custom_call.1} parent=15 // pred_check
          %p193 = pneg %p92
        $region22: #{tpu_custom_call.1} parent=15 // pred_check_branch
          %195 = sbr.rel (%p193) target = $region24
        $region23: #{tpu_custom_call.1} parent=15 // pred_region
          %s196 = sand.u32 %s82, 1
          %s197 = scalar_lea.sflag [#allocation6], %s196
          %s198 = sand.u32 %s82, 1
          %s199 = smul.addr %s198, 16
          %s200 = scalar_lea.vmem [#allocation5], %s199
          %s201 = sadd.s32 %s29, %s30
          %p202 = scmp.lt.s32.totalorder %s201, 0
          %s203 = scalar_select %p202, %s201, 0
          %s204 = smul.u32 2, %s203
          %s206 = ssub.s32 256, 256
          %207 = vsyncadd %s197, %s206
          %s208 = smul.addr %s204, 128
          %s209 = scalar_lea.hbm %s1, %s208
          %s210 = sshll.u32 %s200, 4
          %s211 = int_to_ptr.vmem [resolvable:$true] %s210
          %216 = dma.hbm_to_vmem [thread:$0]  %s209, 256, %s211, %s197, 128, 128, 8
        $region24: #{tpu_custom_call.1} parent=15 // pred_fallthru
          _
      $region16: #{tpu_custom_call.1} parent=5 // pred_fallthru
        _
      %p217 = scmp.le.s32.totalorder 1, %s22
      %p218 = scmp.lt.s32.totalorder %s22, 3
      %p219 = pnand %p217, %p218
      %p220 = pneg %p219
      // Predicated region
      $region25: #{tpu_custom_call.1} parent=5 // pred_check
        _
      $region26: #{tpu_custom_call.1} parent=5 // pred_check_branch
        %222 = sbr.rel (%p219) target = $region28
      $region27: #{tpu_custom_call.1} parent=5 // pred_region
        %s223 = ssub.s32 %s22, 1
        %s224 = sand.u32 %s53, 1
        %s225 = scalar_lea.sflag [#allocation3], %s224
        %s226 = sand.u32 %s53, 1
        %s227 = smul.addr %s226, 16
        %s228 = scalar_lea.vmem [#allocation2], %s227
        // Predicated region
        $region29: #{tpu_custom_call.1} parent=27 // pred_check
          %p229 = pneg %p66
        $region30: #{tpu_custom_call.1} parent=27 // pred_check_branch
          %231 = sbr.rel (%p229) target = $region32
        $region31: #{tpu_custom_call.1} parent=27 // pred_region
          %232 = dma.done %s225, 256
        $region32: #{tpu_custom_call.1} parent=27 // pred_fallthru
          _
        %s233 = sand.u32 %s85, 1
        %s234 = scalar_lea.sflag [#allocation6], %s233
        %s235 = sand.u32 %s85, 1
        %s236 = smul.addr %s235, 16
        %s237 = scalar_lea.vmem [#allocation5], %s236
        // Predicated region
        $region33: #{tpu_custom_call.1} parent=27 // pred_check
          %p238 = pneg %p98
        $region34: #{tpu_custom_call.1} parent=27 // pred_check_branch
          %240 = sbr.rel (%p238) target = $region36
        $region35: #{tpu_custom_call.1} parent=27 // pred_region
          %241 = dma.done %s234, 256
        $region36: #{tpu_custom_call.1} parent=27 // pred_fallthru
          _
        %s242 = sand.u32 %s53, 1
        %s243 = scalar_lea.sflag [#allocation3], %s242
        %s244 = sand.u32 %s53, 1
        %s245 = smul.addr %s244, 16
        %s246 = scalar_lea.vmem [#allocation2], %s245
        %p247 = pneg %p66
        %p248 = pneg %p63
        %s249 = sand.u32 %s85, 1
        %s250 = scalar_lea.sflag [#allocation6], %s249
        %s251 = sand.u32 %s85, 1
        %s252 = smul.addr %s251, 16
        %s253 = scalar_lea.vmem [#allocation5], %s252
        %p254 = pneg %p98
        %p255 = pneg %p95
        %p256 = pneg %p124
        %p257 = pneg %p121
        %s258 = sand.u32 %s111, 1
        %s259 = scalar_lea.sflag [#allocation4], %s258
        %s260 = sand.u32 %s111, 1
        %s261 = smul.addr %s260, 8
        %s262 = scalar_lea.vmem [#allocation7], %s261
        %p263 = pneg %p150
        %p264 = pneg %p147
        %s265 = sand.u32 %s137, 1
        %s266 = scalar_lea.sflag [#allocation9], %s265
        %s267 = sand.u32 %s137, 1
        %s268 = smul.addr %s267, 8
        %s269 = scalar_lea.vmem [#allocation8], %s268
        %s270 = sadd.s32 %s31, %s32
        %p271 = scmp.lt.s32.totalorder %s270, 0
        %s272 = scalar_select %p271, %s270, 0
        %s273 = smul.u32 2, %s272
        %s274 = sadd.s32 %s31, %s32
        %p275 = scmp.lt.s32.totalorder %s274, 0
        %s276 = scalar_select %p275, %s274, 0
        %s277 = smul.u32 2, %s276
        %p278 = scmp.eq.s32.totalorder %s32, 0
        // Predicated region
        $region37: #{tpu_custom_call.1} parent=27 // pred_check
          %p279 = pneg %p278
        $region38: #{tpu_custom_call.1} parent=27 // pred_check_branch
          %281 = sbr.rel (%p279) target = $region40
        $region39: #{tpu_custom_call.1} parent=27 // pred_region
          %282 = vst [vmem:[%s262] sm:$0xff] 0.0
          %283 = vst [vmem:[%s269] sm:$0xff] 0.0
        $region40: #{tpu_custom_call.1} parent=27 // pred_fallthru
          _
        %s284 = sadd.s32 %s31, %s32
        %s285 = smul.u32 %s284, 16
        %v286 = vlaneseq
        %v287 = vshrl.u32 %v286, 7
        %v288 = vadd.s32 %v287, 8
        %v289 = vstv %s285
        %v290 = vadd.s32 %v289, %v287
        %v291 = vadd.s32 %v289, %v288
        %vm292 = vcmp.lt.s32.totalorder %v290, 16
        %vm293 = vcmp.lt.s32.totalorder %v291, 16
        %v294 = vld [vmem:[%s228] sm:$0xff]
        %v295 = vld [vmem:[%s228 + $0x8] sm:$0xff]
        %v296 = vld [vmem:[%s237] sm:$0xff]
        %v297 = vld [vmem:[%s237 + $0x8] sm:$0xff]
        %v298 = vsub.f32 %v294, %v296
        %v299 = vsub.f32 %v295, %v297
        %v300 = vsel %vm292, %v298, 0.0
        %v301 = vsel %vm293, %v299, 0.0
        %v302 = vmul.f32 %v300, %v300
        %v303 = vmul.f32 %v301, %v301
        %v304 = vadd.f32 %v302, %v303
        %v305 = vand.u32 2147483647, %v300
        %v306 = vand.u32 2147483647, %v301
        %v307 = vadd.f32 %v305, %v306
        %v308 = vld [vmem:[%s262] sm:$0xff]
        %v309 = vadd.f32 %v308, %v304
        %310 = vst [vmem:[%s262] sm:$0xff] %v309
        %v311 = vld [vmem:[%s269] sm:$0xff]
        %v312 = vadd.f32 %v311, %v307
        %313 = vst [vmem:[%s269] sm:$0xff] %v312
        %s314 = sand.u32 %s111, 1
        %s315 = scalar_lea.sflag [#allocation4], %s314
        %s316 = sand.u32 %s111, 1
        %s317 = smul.addr %s316, 8
        %s318 = scalar_lea.vmem [#allocation7], %s317
        %s319 = sand.u32 %s137, 1
        %s320 = scalar_lea.sflag [#allocation9], %s319
        %s321 = sand.u32 %s137, 1
        %s322 = smul.addr %s321, 8
        %s323 = scalar_lea.vmem [#allocation8], %s322
        // Predicated region
        $region41: #{tpu_custom_call.1} parent=27 // pred_check
          %p324 = pneg %p121
        $region42: #{tpu_custom_call.1} parent=27 // pred_check_branch
          %326 = sbr.rel (%p324) target = $region44
        $region43: #{tpu_custom_call.1} parent=27 // pred_region
          %s328 = ssub.s32 128, 128
          %329 = vsyncadd %s315, %s328
          %s330 = smul.addr %s31, 128
          %s331 = scalar_lea.hbm %s2, %s330
          %s333 = sshll.u32 %s318, 4
          %s334 = int_to_ptr.vmem [resolvable:$true] %s333
          %336 = dma.vmem_to_hbm [thread:$0]  %s334, 128, %s331, %s315
        $region44: #{tpu_custom_call.1} parent=27 // pred_fallthru
          _
        // Predicated region
        $region45: #{tpu_custom_call.1} parent=27 // pred_check
          %p337 = pneg %p147
        $region46: #{tpu_custom_call.1} parent=27 // pred_check_branch
          %339 = sbr.rel (%p337) target = $region48
        $region47: #{tpu_custom_call.1} parent=27 // pred_region
          %s341 = ssub.s32 128, 128
          %342 = vsyncadd %s320, %s341
          %s343 = smul.addr %s31, 128
          %s344 = scalar_lea.hbm %s3, %s343
          %s346 = sshll.u32 %s323, 4
          %s347 = int_to_ptr.vmem [resolvable:$true] %s346
          %349 = dma.vmem_to_hbm [thread:$0]  %s347, 128, %s344, %s320
        $region48: #{tpu_custom_call.1} parent=27 // pred_fallthru
          _
      $region28: #{tpu_custom_call.1} parent=5 // pred_fallthru
        _
      %p350 = scmp.le.s32.totalorder 2, %s22
      // Predicated region
      $region49: #{tpu_custom_call.1} parent=5 // pred_check
        %p351 = pneg %p350
      $region50: #{tpu_custom_call.1} parent=5 // pred_check_branch
        %353 = sbr.rel (%p351) target = $region52
      $region51: #{tpu_custom_call.1} parent=5 // pred_region
        %s354 = ssub.s32 %s22, 2
        // Predicated region
        $region53: #{tpu_custom_call.1} parent=51 // pred_check
          %p355 = pneg %p127
        $region54: #{tpu_custom_call.1} parent=51 // pred_check_branch
          %357 = sbr.rel (%p355) target = $region56
        $region55: #{tpu_custom_call.1} parent=51 // pred_region
          %s358 = sand.u32 %s112, 1
          %s359 = scalar_lea.sflag [#allocation4], %s358
          %s360 = sand.u32 %s112, 1
          %s361 = smul.addr %s360, 8
          %s362 = scalar_lea.vmem [#allocation7], %s361
          %363 = dma.done %s359, 128
        $region56: #{tpu_custom_call.1} parent=51 // pred_fallthru
          _
        // Predicated region
        $region57: #{tpu_custom_call.1} parent=51 // pred_check
          %p364 = pneg %p153
        $region58: #{tpu_custom_call.1} parent=51 // pred_check_branch
          %366 = sbr.rel (%p364) target = $region60
        $region59: #{tpu_custom_call.1} parent=51 // pred_region
          %s367 = sand.u32 %s138, 1
          %s368 = scalar_lea.sflag [#allocation9], %s367
          %s369 = sand.u32 %s138, 1
          %s370 = smul.addr %s369, 8
          %s371 = scalar_lea.vmem [#allocation8], %s370
          %372 = dma.done %s368, 128
        $region60: #{tpu_custom_call.1} parent=51 // pred_fallthru
          _
      $region52: #{tpu_custom_call.1} parent=5 // pred_fallthru
        _
    $region6: #{tpu_custom_call.1} parent=1 // loop_footer
      %s26 = sadd.s32 1, %s22
    $region7: #{tpu_custom_call.1} parent=1 // loop_footer_branch
      %21 = sbr.rel target = $region3
    $region8: #{tpu_custom_call.1} parent=1 // loop_exit
      _
    %373 = vsyncpa [#allocation3], 1
    %s374 = scalar_lea.sflag [#allocation3], 1
    %375 = vsyncpa %s374, 1
    %376 = vsyncpa [#allocation6], 1
    %s377 = scalar_lea.sflag [#allocation6], 1
    %378 = vsyncpa %s377, 1
    %379 = vsyncpa [#allocation4], 1
    %s380 = scalar_lea.sflag [#allocation4], 1
    %381 = vsyncpa %s380, 1
    %382 = vsyncpa [#allocation9], 1
    %s383 = scalar_lea.sflag [#allocation9], 1
    %384 = vsyncpa %s383, 1

</llo_original>
